<compile_context>
chip_gen: v5e
topology: v5e:2x2
jax: 0.10.0
libtpu: 0.0.40
codegen_flags: <defaults>
</compile_context>

<pallas_src>
import functools

import jax
import jax.numpy as jnp
from jax.experimental import pallas as pl
from jax.experimental.pallas import tpu as pltpu


def _round_up(x, m):
    return ((x + m - 1) // m) * m


# ----------------------------- fused Pallas kernel ------------------------------

def fused_forward_kernel(x_ref, wc_ref, w3_ref, bl_ref, out_ref, patch_ref, *,
                         offsets, n_rows, cin, hw, n_batch, n_classes):
    """Fused conv3x3(+bias+ReLU) -> linear(+bias) -> 2-class probability.

    Layouts (all lane-dense, everything stays in VMEM):
      x_ref     : (Cin, x_pad)          channel-major flattened B*H*W positions on lanes,
                                        zero halo so every shifted tap window is in-bounds
      wc_ref    : (Cout, taps_pad)      conv tap columns (tap-major, channel-minor),
                                        column KH*KW*Cin = conv bias, rest zero
      w3_ref    : (K, Cout, H*W)        batch-independent linear weight mapped onto the
                                        conv-activation layout (invalid positions zero)
      bl_ref    : (K, 1)                linear bias
      out_ref   : (8, 128)              packed output slab: row k lanes [0,B) = logits of
                                        class k, row K lanes [0,B) = probability
      patch_ref : (taps_pad, n_rows)    VMEM im2col scratch (+ ones row for the bias)
    """
    n_taps = len(offsets) * cin

    # ---- im2col patch tile in VMEM: one shifted copy per tap (lane-rotate work on the
    #      XLU/load path, done once — not inside a 27-deep FMA chain).  The full pre-zero
    #      keeps the pad rows finite so (pad * 0-weight) can never produce NaN.
    patch_ref[...] = jnp.zeros_like(patch_ref)
    for t, off in enumerate(offsets):
        patch_ref[t * cin:(t + 1) * cin, :] = x_ref[:, off:off + n_rows]
    # Ones row folds the conv bias into the matmul accumulator.
    patch_ref[n_taps:n_taps + 1, :] = jnp.ones((1, n_rows), jnp.float32)

    # ---- conv (+bias) on the MXU, ReLU on the VPU ----
    conv = jnp.dot(wc_ref[...], patch_ref[...],
                   preferred_element_type=jnp.float32)       # (Cout, n_rows)
    conv = jnp.maximum(conv, 0.0)

    # ---- linear stage: per-class channel reduction batched over all samples ----
    # w3[k] tiled over the batch is O(B) (activation-sized), lane-aligned (hw = 256).
    cls_rows = []
    for k in range(n_classes):
        wk = jnp.concatenate([w3_ref[k]] * n_batch, axis=1)   # (Cout, n_rows)
        cls_rows.append(jnp.sum(wk * conv, axis=0, keepdims=True))   # sublane reduce
    per_class = jnp.concatenate(cls_rows, axis=0)             # (K, n_rows)

    cols = []
    for b in range(n_batch):
        seg = per_class[:, b * hw:(b + 1) * hw]               # 128-aligned slice (K, hw)
        cols.append(jnp.sum(seg, axis=1, keepdims=True))      # lane reduce -> (K, 1)
    logits_kb = jnp.concatenate(cols, axis=1) + bl_ref[...]   # (K, B), class-major

    # ---- epilogue: p = exp(sc)/(exp(sc)+exp(sn)) == sigmoid(sc - sn), exact divide ----
    probs_row = 1.0 / (1.0 + jnp.exp(logits_kb[1:2, :] - logits_kb[0:1, :]))   # (1, B)

    # ---- single packed lane-dense output slab (one dense output DMA) ----
    out_ref[...] = jnp.zeros_like(out_ref)
    out_ref[0:n_classes, 0:n_batch] = logits_kb
    out_ref[n_classes:n_classes + 1, 0:n_batch] = probs_row


# ------------------------------ host-side wrappers -------------------------------

def prepare_params(w_conv, b_conv, w_lin, b_lin, *, height, width):
    """One-time weight layout preparation (hoisted out of the hot forward path)."""
    cout, cin, kh, kw = w_conv.shape
    oh, ow = height - kh + 1, width - kw + 1
    n_classes = w_lin.shape[0]
    hw = height * width
    n_taps = kh * kw * cin
    taps_pad = _round_up(n_taps + 1, 8)

    # Conv taps: column (i*KW + j)*Cin + c == w_conv[:, c, i, j]; column n_taps = bias.
    w_cols = jnp.transpose(w_conv, (0, 2, 3, 1)).reshape(cout, n_taps).astype(jnp.float32)
    wc = jnp.concatenate(
        [w_cols,
         b_conv.astype(jnp.float32).reshape(cout, 1),
         jnp.zeros((cout, taps_pad - n_taps - 1), jnp.float32)], axis=1)   # (Cout, taps_pad)

    # Batch-independent linear weight mapped onto the (Cout, H*W) conv-activation layout.
    # Folds in PyTorch (C,H,W)-flatten order and the valid-position mask (y<OH, x<OW).
    w3 = w_lin.astype(jnp.float32).reshape(n_classes, cout, oh, ow)
    w3 = jnp.pad(w3, ((0, 0), (0, 0), (0, height - oh), (0, width - ow)))
    w3 = w3.reshape(n_classes, cout, hw)                                   # (K, Cout, H*W)

    bl = b_lin.astype(jnp.float32).reshape(n_classes, 1)
    return wc, w3, bl


def build_forward(*, batch, cin, height, width, cout, kh, kw, n_classes):
    """Builds a jitted forward: x (NCHW) -> (logits (B,K), probs (B,))."""
    assert n_classes == 2, "getProbability() is defined for the 2-class DNA head"
    assert n_classes + 1 <= 8 and batch <= 128, "packed (8,128) output slab layout"

    hw = height * width
    n_rows = batch * hw
    n_taps = kh * kw * cin
    taps_pad = _round_up(n_taps + 1, 8)
    max_off = (kh - 1) * width + (kw - 1)
    x_pad = _round_up(n_rows + max_off, 128)       # zero halo so all tap windows fit
    offsets = tuple(i * width + j for i in range(kh) for j in range(kw))

    kernel = functools.partial(
        fused_forward_kernel,
        offsets=offsets, n_rows=n_rows, cin=cin, hw=hw,
        n_batch=batch, n_classes=n_classes)

    # Grid-less pallas_call: whole arrays resident in VMEM (a few 10s of KB total),
    # single packed (8,128) output, no per-step pipeline bookkeeping.
    fused_call = pl.pallas_call(
        kernel,
        out_shape=jax.ShapeDtypeStruct((8, 128), jnp.float32),
        scratch_shapes=[pltpu.VMEM((taps_pad, n_rows), jnp.float32)],
    )

    @jax.jit
    def forward(x_nchw, prepped):
        wc, w3, bl = prepped
        # The only per-call host work: channel-major flatten + zero halo pad (one small
        # fusion).  Callers that keep inputs in (Cin, B*H*W) layout can skip this.
        xt = jnp.transpose(x_nchw.astype(jnp.float32), (1, 0, 2, 3)).reshape(cin, n_rows)
        xt = jnp.pad(xt, ((0, 0), (0, x_pad - n_rows)))
        slab = fused_call(xt, wc, w3, bl)
        logits = slab[:n_classes, :batch].T        # (B, K)
        probs = slab[n_classes, :batch]            # (B,)
        return logits, probs

    return forward


# ---------------------------------- main -------------------------------------

if __name__ == "__main__":
    B, Cin, H, W = 2, 3, 16, 16
    Cout, KH, KW = 8, 3, 3
    OH, OW = H - KH + 1, W - KW + 1
    num_classes = 2

    key = jax.random.PRNGKey(0)
    k1, k2, k3, k4, k5 = jax.random.split(key, 5)
    x = jax.random.normal(k1, (B, Cin, H, W), jnp.float32)

    # Deterministic parameter init (shapes from the DNA / layer factory).
    w_conv = 0.1 * jax.random.normal(k2, (Cout, Cin, KH, KW), jnp.float32)
    b_conv = 0.1 * jax.random.normal(k3, (Cout,), jnp.float32)
    w_lin = 0.05 * jax.random.normal(k4, (num_classes, Cout * OH * OW), jnp.float32)
    b_lin = 0.05 * jax.random.normal(k5, (num_classes,), jnp.float32)

    prepped = prepare_params(w_conv, b_conv, w_lin, b_lin, height=H, width=W)
    forward = build_forward(batch=B, cin=Cin, height=H, width=W,
                            cout=Cout, kh=KH, kw=KW, n_classes=num_classes)

    logits, probs = forward(x, prepped)
    jax.block_until_ready((logits, probs))

    # Pure-JAX reference (same semantics as the PyTorch forward + getProbability).
    conv_ref = jax.lax.conv_general_dilated(
        x, w_conv, window_strides=(1, 1), padding="VALID",
        dimension_numbers=("NCHW", "OIHW", "NCHW"),
    ) + b_conv[None, :, None, None]
    conv_ref = jnp.maximum(conv_ref, 0.0)
    ref_logits = conv_ref.reshape(B, -1) @ w_lin.T + b_lin
    ref_probs = jnp.exp(ref_logits[:, 0]) / (jnp.exp(ref_logits[:, 0]) + jnp.exp(ref_logits[:, 1]))

    # Tolerances leave headroom for the MXU f32 matmul pass decomposition.
    assert jnp.allclose(logits, ref_logits, atol=2e-2, rtol=1e-2), (logits, ref_logits)
    assert jnp.allclose(probs, ref_probs, atol=1e-2, rtol=1e-2), (probs, ref_probs)

    print("KERNEL_OK")
</pallas_src>

<mosaic_0001>
module attributes {stable_mosaic.version = 11 : i64} {
  func.func @fused_forward_kernel(%arg0: memref<3x640xf32, #tpu.memory_space<vmem>>, %arg1: memref<8x32xf32, #tpu.memory_space<vmem>>, %arg2: memref<2x8x256xf32, #tpu.memory_space<vmem>>, %arg3: memref<2x1xf32, #tpu.memory_space<vmem>>, %arg4: memref<8x128xf32, #tpu.memory_space<vmem>>, %arg5: memref<32x512xf32, #tpu.memory_space<vmem>>) attributes {dimension_semantics = [], scalar_prefetch = 0 : i64, scratch_operands = 1 : i64, tpu.core_type = #tpu.core_type<tc>} {
    %cst = arith.constant 0.000000e+00 : f32
    %0 = vector.broadcast %cst : f32 to vector<32x512xf32>
    %c0 = arith.constant 0 : index
    %c0_0 = arith.constant 0 : index
    %1 = vector.load %arg5[%c0, %c0_0] : memref<32x512xf32, #tpu.memory_space<vmem>>, vector<32x512xf32>
    tpu.vector_store %arg5[%c0, %c0_0], %0 {strides = array<i32>} : memref<32x512xf32, #tpu.memory_space<vmem>>, vector<32x512xf32>,
    %c0_1 = arith.constant 0 : index
    %c0_2 = arith.constant 0 : index
    %2 = vector.load %arg0[%c0_1, %c0_2] : memref<3x640xf32, #tpu.memory_space<vmem>>, vector<3x512xf32>
    %c0_3 = arith.constant 0 : index
    %c0_4 = arith.constant 0 : index
    %3 = vector.load %arg5[%c0_3, %c0_4] : memref<32x512xf32, #tpu.memory_space<vmem>>, vector<3x512xf32>
    tpu.vector_store %arg5[%c0_3, %c0_4], %2 {strides = array<i32>} : memref<32x512xf32, #tpu.memory_space<vmem>>, vector<3x512xf32>,
    %c0_5 = arith.constant 0 : index
    %c1 = arith.constant 1 : index
    %4 = vector.load %arg0[%c0_5, %c1] : memref<3x640xf32, #tpu.memory_space<vmem>>, vector<3x512xf32>
    %c3 = arith.constant 3 : index
    %c0_6 = arith.constant 0 : index
    %5 = vector.load %arg5[%c3, %c0_6] : memref<32x512xf32, #tpu.memory_space<vmem>>, vector<3x512xf32>
    tpu.vector_store %arg5[%c3, %c0_6], %4 {strides = array<i32>} : memref<32x512xf32, #tpu.memory_space<vmem>>, vector<3x512xf32>,
    %c0_7 = arith.constant 0 : index
    %c2 = arith.constant 2 : index
    %6 = vector.load %arg0[%c0_7, %c2] : memref<3x640xf32, #tpu.memory_space<vmem>>, vector<3x512xf32>
    %c6 = arith.constant 6 : index
    %c0_8 = arith.constant 0 : index
    %7 = vector.load %arg5[%c6, %c0_8] : memref<32x512xf32, #tpu.memory_space<vmem>>, vector<3x512xf32>
    tpu.vector_store %arg5[%c6, %c0_8], %6 {strides = array<i32>} : memref<32x512xf32, #tpu.memory_space<vmem>>, vector<3x512xf32>,
    %c0_9 = arith.constant 0 : index
    %c16 = arith.constant 16 : index
    %8 = vector.load %arg0[%c0_9, %c16] : memref<3x640xf32, #tpu.memory_space<vmem>>, vector<3x512xf32>
    %c9 = arith.constant 9 : index
    %c0_10 = arith.constant 0 : index
    %9 = vector.load %arg5[%c9, %c0_10] : memref<32x512xf32, #tpu.memory_space<vmem>>, vector<3x512xf32>
    tpu.vector_store %arg5[%c9, %c0_10], %8 {strides = array<i32>} : memref<32x512xf32, #tpu.memory_space<vmem>>, vector<3x512xf32>,
    %c0_11 = arith.constant 0 : index
    %c17 = arith.constant 17 : index
    %10 = vector.load %arg0[%c0_11, %c17] : memref<3x640xf32, #tpu.memory_space<vmem>>, vector<3x512xf32>
    %c12 = arith.constant 12 : index
    %c0_12 = arith.constant 0 : index
    %11 = vector.load %arg5[%c12, %c0_12] : memref<32x512xf32, #tpu.memory_space<vmem>>, vector<3x512xf32>
    tpu.vector_store %arg5[%c12, %c0_12], %10 {strides = array<i32>} : memref<32x512xf32, #tpu.memory_space<vmem>>, vector<3x512xf32>,
    %c0_13 = arith.constant 0 : index
    %c18 = arith.constant 18 : index
    %12 = vector.load %arg0[%c0_13, %c18] : memref<3x640xf32, #tpu.memory_space<vmem>>, vector<3x512xf32>
    %c15 = arith.constant 15 : index
    %c0_14 = arith.constant 0 : index
    %13 = vector.load %arg5[%c15, %c0_14] : memref<32x512xf32, #tpu.memory_space<vmem>>, vector<3x512xf32>
    tpu.vector_store %arg5[%c15, %c0_14], %12 {strides = array<i32>} : memref<32x512xf32, #tpu.memory_space<vmem>>, vector<3x512xf32>,
    %c0_15 = arith.constant 0 : index
    %c32 = arith.constant 32 : index
    %14 = vector.load %arg0[%c0_15, %c32] : memref<3x640xf32, #tpu.memory_space<vmem>>, vector<3x512xf32>
    %c18_16 = arith.constant 18 : index
    %c0_17 = arith.constant 0 : index
    %15 = vector.load %arg5[%c18_16, %c0_17] : memref<32x512xf32, #tpu.memory_space<vmem>>, vector<3x512xf32>
    tpu.vector_store %arg5[%c18_16, %c0_17], %14 {strides = array<i32>} : memref<32x512xf32, #tpu.memory_space<vmem>>, vector<3x512xf32>,
    %c0_18 = arith.constant 0 : index
    %c33 = arith.constant 33 : index
    %16 = vector.load %arg0[%c0_18, %c33] : memref<3x640xf32, #tpu.memory_space<vmem>>, vector<3x512xf32>
    %c21 = arith.constant 21 : index
    %c0_19 = arith.constant 0 : index
    %17 = vector.load %arg5[%c21, %c0_19] : memref<32x512xf32, #tpu.memory_space<vmem>>, vector<3x512xf32>
    tpu.vector_store %arg5[%c21, %c0_19], %16 {strides = array<i32>} : memref<32x512xf32, #tpu.memory_space<vmem>>, vector<3x512xf32>,
    %c0_20 = arith.constant 0 : index
    %c34 = arith.constant 34 : index
    %18 = vector.load %arg0[%c0_20, %c34] : memref<3x640xf32, #tpu.memory_space<vmem>>, vector<3x512xf32>
    %c24 = arith.constant 24 : index
    %c0_21 = arith.constant 0 : index
    %19 = vector.load %arg5[%c24, %c0_21] : memref<32x512xf32, #tpu.memory_space<vmem>>, vector<3x512xf32>
    tpu.vector_store %arg5[%c24, %c0_21], %18 {strides = array<i32>} : memref<32x512xf32, #tpu.memory_space<vmem>>, vector<3x512xf32>,
    %cst_22 = arith.constant 1.000000e+00 : f32
    %20 = vector.broadcast %cst_22 : f32 to vector<1x512xf32>
    %c27 = arith.constant 27 : index
    %c0_23 = arith.constant 0 : index
    %21 = vector.load %arg5[%c27, %c0_23] : memref<32x512xf32, #tpu.memory_space<vmem>>, vector<1x512xf32>
    tpu.vector_store %arg5[%c27, %c0_23], %20 {strides = array<i32>} : memref<32x512xf32, #tpu.memory_space<vmem>>, vector<1x512xf32>,
    %c0_24 = arith.constant 0 : index
    %c0_25 = arith.constant 0 : index
    %22 = vector.load %arg1[%c0_24, %c0_25] : memref<8x32xf32, #tpu.memory_space<vmem>>, vector<8x32xf32>
    %c0_26 = arith.constant 0 : index
    %c0_27 = arith.constant 0 : index
    %23 = vector.load %arg5[%c0_26, %c0_27] : memref<32x512xf32, #tpu.memory_space<vmem>>, vector<32x512xf32>
    %cst_28 = arith.constant dense<0.000000e+00> : vector<8x512xf32>
    %24 = tpu.matmul %22, %23, %cst_28 {dimension_numbers = #tpu.dot_dimension_numbers<[1], [0], [0], [1], [0, 0, 1, 1], [], []>} : vector<8x32xf32>, vector<32x512xf32>, vector<8x512xf32> -> vector<8x512xf32>
    %cst_29 = arith.constant 0.000000e+00 : f32
    %25 = vector.broadcast %cst_29 : f32 to vector<8x512xf32>
    %26 = arith.maximumf %24, %25 : vector<8x512xf32>
    %c0_30 = arith.constant 0 : index
    %c0_31 = arith.constant 0 : index
    %c0_32 = arith.constant 0 : index
    %27 = vector.load %arg2[%c0_30, %c0_31, %c0_32] : memref<2x8x256xf32, #tpu.memory_space<vmem>>, vector<1x8x256xf32>
    %28 = vector.shape_cast %27 : vector<1x8x256xf32> to vector<8x256xf32>
    %29 = tpu.concatenate %28, %28 in 1 : vector<8x256xf32>, vector<8x256xf32> -> vector<8x512xf32>
    %30 = arith.mulf %29, %26 : vector<8x512xf32>
    %cst_33 = arith.constant dense<0.000000e+00> : vector<512xf32>
    %31 = vector.multi_reduction <add>, %30, %cst_33 [0] : vector<8x512xf32> to vector<512xf32>
    %32 = vector.shape_cast %31 : vector<512xf32> to vector<1x512xf32>
    %c1_34 = arith.constant 1 : index
    %c0_35 = arith.constant 0 : index
    %c0_36 = arith.constant 0 : index
    %33 = vector.load %arg2[%c1_34, %c0_35, %c0_36] : memref<2x8x256xf32, #tpu.memory_space<vmem>>, vector<1x8x256xf32>
    %34 = vector.shape_cast %33 : vector<1x8x256xf32> to vector<8x256xf32>
    %35 = tpu.concatenate %34, %34 in 1 : vector<8x256xf32>, vector<8x256xf32> -> vector<8x512xf32>
    %36 = arith.mulf %35, %26 : vector<8x512xf32>
    %cst_37 = arith.constant dense<0.000000e+00> : vector<512xf32>
    %37 = vector.multi_reduction <add>, %36, %cst_37 [0] : vector<8x512xf32> to vector<512xf32>
    %38 = vector.shape_cast %37 : vector<512xf32> to vector<1x512xf32>
    %39 = tpu.concatenate %32, %38 in 0 : vector<1x512xf32>, vector<1x512xf32> -> vector<2x512xf32>
    %40 = vector.extract_strided_slice %39 {offsets = [0, 0], sizes = [2, 256], strides = [1, 1]} : vector<2x512xf32> to vector<2x256xf32>
    %cst_38 = arith.constant dense<0.000000e+00> : vector<2xf32>
    %41 = vector.multi_reduction <add>, %40, %cst_38 [1] : vector<2x256xf32> to vector<2xf32>
    %42 = vector.shape_cast %41 : vector<2xf32> to vector<2x1xf32>
    %43 = vector.extract_strided_slice %39 {offsets = [0, 256], sizes = [2, 256], strides = [1, 1]} : vector<2x512xf32> to vector<2x256xf32>
    %cst_39 = arith.constant dense<0.000000e+00> : vector<2xf32>
    %44 = vector.multi_reduction <add>, %43, %cst_39 [1] : vector<2x256xf32> to vector<2xf32>
    %45 = vector.shape_cast %44 : vector<2xf32> to vector<2x1xf32>
    %46 = tpu.concatenate %42, %45 in 1 : vector<2x1xf32>, vector<2x1xf32> -> vector<2x2xf32>
    %c0_40 = arith.constant 0 : index
    %c0_41 = arith.constant 0 : index
    %47 = vector.load %arg3[%c0_40, %c0_41] : memref<2x1xf32, #tpu.memory_space<vmem>>, vector<2x1xf32>
    %48 = vector.broadcast %47 : vector<2x1xf32> to vector<2x2xf32>
    %49 = arith.addf %46, %48 : vector<2x2xf32>
    %50 = vector.extract_strided_slice %49 {offsets = [1, 0], sizes = [1, 2], strides = [1, 1]} : vector<2x2xf32> to vector<1x2xf32>
    %51 = vector.extract_strided_slice %49 {offsets = [0, 0], sizes = [1, 2], strides = [1, 1]} : vector<2x2xf32> to vector<1x2xf32>
    %52 = arith.subf %50, %51 : vector<1x2xf32>
    %53 = math.exp %52 : vector<1x2xf32>
    %cst_42 = arith.constant 1.000000e+00 : f32
    %54 = vector.broadcast %cst_42 : f32 to vector<1x2xf32>
    %55 = arith.addf %54, %53 : vector<1x2xf32>
    %cst_43 = arith.constant 1.000000e+00 : f32
    %56 = vector.broadcast %cst_43 : f32 to vector<1x2xf32>
    %57 = arith.divf %56, %55 : vector<1x2xf32>
    %cst_44 = arith.constant 0.000000e+00 : f32
    %58 = vector.broadcast %cst_44 : f32 to vector<8x128xf32>
    %c0_45 = arith.constant 0 : index
    %c0_46 = arith.constant 0 : index
    %59 = vector.load %arg4[%c0_45, %c0_46] : memref<8x128xf32, #tpu.memory_space<vmem>>, vector<8x128xf32>
    tpu.vector_store %arg4[%c0_45, %c0_46], %58 {strides = array<i32>} : memref<8x128xf32, #tpu.memory_space<vmem>>, vector<8x128xf32>,
    %c0_47 = arith.constant 0 : index
    %c0_48 = arith.constant 0 : index
    %60 = vector.load %arg4[%c0_47, %c0_48] : memref<8x128xf32, #tpu.memory_space<vmem>>, vector<2x2xf32>
    tpu.vector_store %arg4[%c0_47, %c0_48], %49 {strides = array<i32>} : memref<8x128xf32, #tpu.memory_space<vmem>>, vector<2x2xf32>,
    %c2_49 = arith.constant 2 : index
    %c0_50 = arith.constant 0 : index
    %61 = vector.load %arg4[%c2_49, %c0_50] : memref<8x128xf32, #tpu.memory_space<vmem>>, vector<1x2xf32>
    tpu.vector_store %arg4[%c2_49, %c0_50], %57 {strides = array<i32>} : memref<8x128xf32, #tpu.memory_space<vmem>>, vector<1x2xf32>,
    return
  }
}

</mosaic_0001>

<llo_original>
// kernel: forward.1
$region0: #{forward.1}
  #allocation0 [shape = 'u32[]', space=smem, size = 0x4, offset = 0x4, fixed_abs, tag = 'smem constant byte address 0x4 - core index']
  #allocation1 [shape = 'u32[72,128]{1,0:T(1,128)}', space=vmem, size = 0x9000, scoped, tag = 'internal scratch']
  #allocation2 [shape = 'f32[32,512]{1,0:T(8,128)}', space=vmem, size = 0x10000, scoped, tag = 'scratch operand']
  %s0 = inlined_call_operand.vmem [shape: f32[3,640], index: 0, kind: input, shape index: {}]
  %s1 = inlined_call_operand.vmem [shape: f32[8,32], index: 1, kind: input, shape index: {}]
  %s2 = inlined_call_operand.vmem [shape: f32[2,8,256], index: 2, kind: input, shape index: {}]
  %s3 = inlined_call_operand.vmem [shape: f32[2,1], index: 3, kind: input, shape index: {}]
  %s4 = inlined_call_operand.vmem [shape: f32[8,128], index: 4, kind: output, shape index: {}]
  %s5 = sld [smem:[#allocation0]]
  $region26: #{forward.1} parent=0
    _
  %s7 = ssub.s32 1, %s5
  %s8 = scalar_select 0, %s7, %s5
  // Predicated region
  $region2: #{forward.1} parent=0 // pred_check
    _
  $region3: #{forward.1} parent=0 // pred_check_branch
    %10 = sbr.rel (0) target = $region5
  $region4: #{forward.1} parent=0 // pred_region
    _
  $region5: #{forward.1} parent=0 // pred_fallthru
    _
  // Predicated region
  $region6: #{forward.1} parent=0 // pred_check
    _
  $region7: #{forward.1} parent=0 // pred_check_branch
    %12 = sbr.rel (0) target = $region9
  $region8: #{forward.1} parent=0 // pred_region
    _
  $region9: #{forward.1} parent=0 // pred_fallthru
    _
  // Predicated region
  $region10: #{forward.1} parent=0 // pred_check
    _
  $region11: #{forward.1} parent=0 // pred_check_branch
    %14 = sbr.rel (0) target = $region13
  $region12: #{forward.1} parent=0 // pred_region
    _
  $region13: #{forward.1} parent=0 // pred_fallthru
    _
  // Predicated region
  $region14: #{forward.1} parent=0 // pred_check
    _
  $region15: #{forward.1} parent=0 // pred_check_branch
    %16 = sbr.rel (0) target = $region17
  $region16: #{forward.1} parent=0 // pred_region
    _
  $region17: #{forward.1} parent=0 // pred_fallthru
    _
  %17 = vst [vmem:[#allocation2] sm:$0xff] 0.0
  %18 = vst [vmem:[#allocation2 + $0x8] sm:$0xff] 0.0
  %19 = vst [vmem:[#allocation2 + $0x10] sm:$0xff] 0.0
  %20 = vst [vmem:[#allocation2 + $0x18] sm:$0xff] 0.0
  %21 = vst [vmem:[#allocation2 + $0x20] sm:$0xff] 0.0
  %22 = vst [vmem:[#allocation2 + $0x28] sm:$0xff] 0.0
  %23 = vst [vmem:[#allocation2 + $0x30] sm:$0xff] 0.0
  %24 = vst [vmem:[#allocation2 + $0x38] sm:$0xff] 0.0
  %25 = vst [vmem:[#allocation2 + $0x40] sm:$0xff] 0.0
  %26 = vst [vmem:[#allocation2 + $0x48] sm:$0xff] 0.0
  %27 = vst [vmem:[#allocation2 + $0x50] sm:$0xff] 0.0
  %28 = vst [vmem:[#allocation2 + $0x58] sm:$0xff] 0.0
  %29 = vst [vmem:[#allocation2 + $0x60] sm:$0xff] 0.0
  %30 = vst [vmem:[#allocation2 + $0x68] sm:$0xff] 0.0
  %31 = vst [vmem:[#allocation2 + $0x70] sm:$0xff] 0.0
  %32 = vst [vmem:[#allocation2 + $0x78] sm:$0xff] 0.0
  %v33 = vld [vmem:[%s0] sm:$0x77]
  %v34 = vld [vmem:[%s0 + $0x8] sm:$0x77]
  %37 = vst [vmem:[#allocation1] ss:$2 sm:$0xff] %v33
  %s38 = scalar_lea.vmem [#allocation1], 16
  %39 = vst [vmem:[%s38] ss:$2 sm:$0xff] %v34
  %v40 = vld.sshfl [vmem:[#allocation1] sm:$0xff pattern:$0x75316420]
  %v41 = vld.sshfl [vmem:[#allocation1 + $0x8] sm:$0xff pattern:$0x75316420]
  %v42 = vld.sshfl [vmem:[#allocation1 + $0x10] sm:$0xff pattern:$0x75316420]
  %v43 = vld.sshfl [vmem:[#allocation1 + $0x18] sm:$0xff pattern:$0x75316420]
  %48 = vst [vmem:[#allocation2] sm:$0x7] %v40
  %49 = vst [vmem:[#allocation2 + $0x8] sm:$0x7] %v41
  %50 = vst [vmem:[#allocation2 + $0x10] sm:$0x7] %v42
  %51 = vst [vmem:[#allocation2 + $0x18] sm:$0x7] %v43
  %v52 = vld [vmem:[%s0] sm:$0x77]
  %v53 = vld [vmem:[%s0 + $0x8] sm:$0x77]
  %v54 = vld [vmem:[%s0 + $0x10] sm:$0x7]
  %58 = vst [vmem:[#allocation1] ss:$2 sm:$0xff] %v52
  %s59 = scalar_lea.vmem [#allocation1], 16
  %60 = vst [vmem:[%s59] ss:$2 sm:$0xff] %v53
  %s61 = scalar_lea.vmem [#allocation1], 32
  %62 = vst [vmem:[%s61] ss:$2 sm:$0xff] %v54
  %v63 = vld.sshfl [vmem:[#allocation1] sm:$0xff pattern:$0x75316420]
  %v64 = vld.sshfl [vmem:[#allocation1 + $0x8] sm:$0xff pattern:$0x75316420]
  %v65 = vld.sshfl [vmem:[#allocation1 + $0x10] sm:$0xff pattern:$0x75316420]
  %v66 = vld.sshfl [vmem:[#allocation1 + $0x18] sm:$0xff pattern:$0x75316420]
  %v67 = vld.sshfl [vmem:[#allocation1 + $0x20] sm:$0xff pattern:$0x75316420]
  %v68 = vrot.slane %v63, 5
  %v69 = vrot.slane %v64, 5
  %v70 = vrot.slane %v65, 5
  %v71 = vrot.slane %v66, 5
  %v72 = vrot.slane %v67, 5
  %73 = vrot.lane.b32.xlu0 %v68, 127
  %v74 = vpop.permute.xlu0 %73
  %75 = vrot.lane.b32.xlu0 %v69, 127
  %v76 = vpop.permute.xlu0 %75
  %77 = vrot.lane.b32.xlu0 %v70, 127
  %v78 = vpop.permute.xlu0 %77
  %79 = vrot.lane.b32.xlu0 %v71, 127
  %v80 = vpop.permute.xlu0 %79
  %81 = vrot.lane.b32.xlu0 %v72, 127
  %v82 = vpop.permute.xlu0 %81
  %vm83 = vcmask 1039360
  %v84 = vsel %vm83, %v74, %v76
  %v85 = vsel %vm83, %v76, %v78
  %v86 = vsel %vm83, %v78, %v80
  %v87 = vsel %vm83, %v80, %v82
  %92 = vst [vmem:[#allocation2] sm:$0x38] %v84
  %93 = vst [vmem:[#allocation2 + $0x8] sm:$0x38] %v85
  %94 = vst [vmem:[#allocation2 + $0x10] sm:$0x38] %v86
  %95 = vst [vmem:[#allocation2 + $0x18] sm:$0x38] %v87
  %v96 = vld [vmem:[%s0] sm:$0x77]
  %v97 = vld [vmem:[%s0 + $0x8] sm:$0x77]
  %v98 = vld [vmem:[%s0 + $0x10] sm:$0x7]
  %102 = vst [vmem:[#allocation1] ss:$2 sm:$0xff] %v96
  %s103 = scalar_lea.vmem [#allocation1], 16
  %104 = vst [vmem:[%s103] ss:$2 sm:$0xff] %v97
  %s105 = scalar_lea.vmem [#allocation1], 32
  %106 = vst [vmem:[%s105] ss:$2 sm:$0xff] %v98
  %v107 = vld.sshfl [vmem:[#allocation1] sm:$0xff pattern:$0x75316420]
  %v108 = vld.sshfl [vmem:[#allocation1 + $0x8] sm:$0xff pattern:$0x75316420]
  %v109 = vld.sshfl [vmem:[#allocation1 + $0x10] sm:$0xff pattern:$0x75316420]
  %v110 = vld.sshfl [vmem:[#allocation1 + $0x18] sm:$0xff pattern:$0x75316420]
  %v111 = vld.sshfl [vmem:[#allocation1 + $0x20] sm:$0xff pattern:$0x75316420]
  %v112 = vrot.slane %v107, 2
  %v113 = vrot.slane %v108, 2
  %v114 = vrot.slane %v109, 2
  %v115 = vrot.slane %v110, 2
  %v116 = vrot.slane %v111, 2
  %117 = vrot.lane.b32.xlu0 %v112, 126
  %v118 = vpop.permute.xlu0 %117
  %119 = vrot.lane.b32.xlu0 %v113, 126
  %v120 = vpop.permute.xlu0 %119
  %121 = vrot.lane.b32.xlu0 %v114, 126
  %v122 = vpop.permute.xlu0 %121
  %123 = vrot.lane.b32.xlu0 %v115, 126
  %v124 = vpop.permute.xlu0 %123
  %125 = vrot.lane.b32.xlu0 %v116, 126
  %v126 = vpop.permute.xlu0 %125
  %vm127 = vcmask 1031168
  %v128 = vsel %vm127, %v118, %v120
  %v129 = vsel %vm127, %v120, %v122
  %v130 = vsel %vm127, %v122, %v124
  %v131 = vsel %vm127, %v124, %v126
  %136 = vst [vmem:[#allocation2] sm:$0xc0] %v128
  %137 = vst [vmem:[#allocation2 + $0x8] sm:$0xc0] %v129
  %138 = vst [vmem:[#allocation2 + $0x10] sm:$0xc0] %v130
  %139 = vst [vmem:[#allocation2 + $0x18] sm:$0xc0] %v131
  %140 = vst [vmem:[#allocation2 + $0x20] sm:$0x1] %v128
  %141 = vst [vmem:[#allocation2 + $0x28] sm:$0x1] %v129
  %142 = vst [vmem:[#allocation2 + $0x30] sm:$0x1] %v130
  %143 = vst [vmem:[#allocation2 + $0x38] sm:$0x1] %v131
  %v144 = vld [vmem:[%s0] sm:$0x77]
  %v145 = vld [vmem:[%s0 + $0x8] sm:$0x77]
  %v146 = vld [vmem:[%s0 + $0x10] sm:$0x7]
  %150 = vst [vmem:[#allocation1] ss:$2 sm:$0xff] %v144
  %s151 = scalar_lea.vmem [#allocation1], 16
  %152 = vst [vmem:[%s151] ss:$2 sm:$0xff] %v145
  %s153 = scalar_lea.vmem [#allocation1], 32
  %154 = vst [vmem:[%s153] ss:$2 sm:$0xff] %v146
  %v155 = vld.sshfl [vmem:[#allocation1] sm:$0xff pattern:$0x75316420]
  %v156 = vld.sshfl [vmem:[#allocation1 + $0x8] sm:$0xff pattern:$0x75316420]
  %v157 = vld.sshfl [vmem:[#allocation1 + $0x10] sm:$0xff pattern:$0x75316420]
  %v158 = vld.sshfl [vmem:[#allocation1 + $0x18] sm:$0xff pattern:$0x75316420]
  %v159 = vld.sshfl [vmem:[#allocation1 + $0x20] sm:$0xff pattern:$0x75316420]
  %v160 = vrot.slane %v155, 7
  %v161 = vrot.slane %v156, 7
  %v162 = vrot.slane %v157, 7
  %v163 = vrot.slane %v158, 7
  %v164 = vrot.slane %v159, 7
  %165 = vrot.lane.b32.xlu0 %v160, 112
  %v166 = vpop.permute.xlu0 %165
  %167 = vrot.lane.b32.xlu0 %v161, 112
  %v168 = vpop.permute.xlu0 %167
  %169 = vrot.lane.b32.xlu0 %v162, 112
  %v170 = vpop.permute.xlu0 %169
  %171 = vrot.lane.b32.xlu0 %v163, 112
  %v172 = vpop.permute.xlu0 %171
  %173 = vrot.lane.b32.xlu0 %v164, 112
  %v174 = vpop.permute.xlu0 %173
  %vm175 = vcmask 916480
  %v176 = vsel %vm175, %v166, %v168
  %v177 = vsel %vm175, %v168, %v170
  %v178 = vsel %vm175, %v170, %v172
  %v179 = vsel %vm175, %v172, %v174
  %184 = vst [vmem:[#allocation2 + $0x20] sm:$0xe] %v176
  %185 = vst [vmem:[#allocation2 + $0x28] sm:$0xe] %v177
  %186 = vst [vmem:[#allocation2 + $0x30] sm:$0xe] %v178
  %187 = vst [vmem:[#allocation2 + $0x38] sm:$0xe] %v179
  %v188 = vld [vmem:[%s0] sm:$0x77]
  %v189 = vld [vmem:[%s0 + $0x8] sm:$0x77]
  %v190 = vld [vmem:[%s0 + $0x10] sm:$0x7]
  %s194 = scalar_lea.vmem [#allocation1], 1
  %195 = vst [vmem:[%s194] ss:$2 sm:$0xff] %v188
  %s196 = scalar_lea.vmem [#allocation1], 17
  %197 = vst [vmem:[%s196] ss:$2 sm:$0xff] %v189
  %s198 = scalar_lea.vmem [#allocation1], 33
  %199 = vst [vmem:[%s198] ss:$2 sm:$0xff] %v190
  %v200 = vld.sshfl [vmem:[#allocation1] sm:$0xff pattern:$0x75316420]
  %v201 = vld.sshfl [vmem:[#allocation1 + $0x8] sm:$0xff pattern:$0x75316420]
  %v202 = vld.sshfl [vmem:[#allocation1 + $0x10] sm:$0xff pattern:$0x75316420]
  %v203 = vld.sshfl [vmem:[#allocation1 + $0x18] sm:$0xff pattern:$0x75316420]
  %v204 = vld.sshfl [vmem:[#allocation1 + $0x20] sm:$0xff pattern:$0x75316420]
  %205 = vrot.lane.b32.xlu0 %v200, 111
  %v206 = vpop.permute.xlu0 %205
  %207 = vrot.lane.b32.xlu0 %v201, 111
  %v208 = vpop.permute.xlu0 %207
  %209 = vrot.lane.b32.xlu0 %v202, 111
  %v210 = vpop.permute.xlu0 %209
  %211 = vrot.lane.b32.xlu0 %v203, 111
  %v212 = vpop.permute.xlu0 %211
  %213 = vrot.lane.b32.xlu0 %v204, 111
  %v214 = vpop.permute.xlu0 %213
  %vm215 = vcmask 908288
  %v216 = vsel %vm215, %v206, %v208
  %v217 = vsel %vm215, %v208, %v210
  %v218 = vsel %vm215, %v210, %v212
  %v219 = vsel %vm215, %v212, %v214
  %224 = vst [vmem:[#allocation2 + $0x20] sm:$0x70] %v216
  %225 = vst [vmem:[#allocation2 + $0x28] sm:$0x70] %v217
  %226 = vst [vmem:[#allocation2 + $0x30] sm:$0x70] %v218
  %227 = vst [vmem:[#allocation2 + $0x38] sm:$0x70] %v219
  %v228 = vld [vmem:[%s0] sm:$0x77]
  %v229 = vld [vmem:[%s0 + $0x8] sm:$0x77]
  %v230 = vld [vmem:[%s0 + $0x10] sm:$0x7]
  %234 = vst [vmem:[#allocation1] ss:$2 sm:$0xff] %v228
  %s235 = scalar_lea.vmem [#allocation1], 16
  %236 = vst [vmem:[%s235] ss:$2 sm:$0xff] %v229
  %s237 = scalar_lea.vmem [#allocation1], 32
  %238 = vst [vmem:[%s237] ss:$2 sm:$0xff] %v230
  %v239 = vld.sshfl [vmem:[#allocation1] sm:$0xff pattern:$0x75316420]
  %v240 = vld.sshfl [vmem:[#allocation1 + $0x8] sm:$0xff pattern:$0x75316420]
  %v241 = vld.sshfl [vmem:[#allocation1 + $0x10] sm:$0xff pattern:$0x75316420]
  %v242 = vld.sshfl [vmem:[#allocation1 + $0x18] sm:$0xff pattern:$0x75316420]
  %v243 = vld.sshfl [vmem:[#allocation1 + $0x20] sm:$0xff pattern:$0x75316420]
  %v244 = vrot.slane %v239, 1
  %v245 = vrot.slane %v240, 1
  %v246 = vrot.slane %v241, 1
  %v247 = vrot.slane %v242, 1
  %v248 = vrot.slane %v243, 1
  %249 = vrot.lane.b32.xlu0 %v244, 110
  %v250 = vpop.permute.xlu0 %249
  %251 = vrot.lane.b32.xlu0 %v245, 110
  %v252 = vpop.permute.xlu0 %251
  %253 = vrot.lane.b32.xlu0 %v246, 110
  %v254 = vpop.permute.xlu0 %253
  %255 = vrot.lane.b32.xlu0 %v247, 110
  %v256 = vpop.permute.xlu0 %255
  %257 = vrot.lane.b32.xlu0 %v248, 110
  %v258 = vpop.permute.xlu0 %257
  %vm259 = vcmask 900096
  %v260 = vsel %vm259, %v250, %v252
  %v261 = vsel %vm259, %v252, %v254
  %v262 = vsel %vm259, %v254, %v256
  %v263 = vsel %vm259, %v256, %v258
  %268 = vst [vmem:[#allocation2 + $0x20] sm:$0x80] %v260
  %269 = vst [vmem:[#allocation2 + $0x28] sm:$0x80] %v261
  %270 = vst [vmem:[#allocation2 + $0x30] sm:$0x80] %v262
  %271 = vst [vmem:[#allocation2 + $0x38] sm:$0x80] %v263
  %272 = vst [vmem:[#allocation2 + $0x40] sm:$0x3] %v260
  %273 = vst [vmem:[#allocation2 + $0x48] sm:$0x3] %v261
  %274 = vst [vmem:[#allocation2 + $0x50] sm:$0x3] %v262
  %275 = vst [vmem:[#allocation2 + $0x58] sm:$0x3] %v263
  %v276 = vld [vmem:[%s0] sm:$0x77]
  %v277 = vld [vmem:[%s0 + $0x8] sm:$0x77]
  %v278 = vld [vmem:[%s0 + $0x10] sm:$0x7]
  %282 = vst [vmem:[#allocation1] ss:$2 sm:$0xff] %v276
  %s283 = scalar_lea.vmem [#allocation1], 16
  %284 = vst [vmem:[%s283] ss:$2 sm:$0xff] %v277
  %s285 = scalar_lea.vmem [#allocation1], 32
  %286 = vst [vmem:[%s285] ss:$2 sm:$0xff] %v278
  %v287 = vld.sshfl [vmem:[#allocation1] sm:$0xff pattern:$0x75316420]
  %v288 = vld.sshfl [vmem:[#allocation1 + $0x8] sm:$0xff pattern:$0x75316420]
  %v289 = vld.sshfl [vmem:[#allocation1 + $0x10] sm:$0xff pattern:$0x75316420]
  %v290 = vld.sshfl [vmem:[#allocation1 + $0x18] sm:$0xff pattern:$0x75316420]
  %v291 = vld.sshfl [vmem:[#allocation1 + $0x20] sm:$0xff pattern:$0x75316420]
  %v292 = vrot.slane %v287, 6
  %v293 = vrot.slane %v288, 6
  %v294 = vrot.slane %v289, 6
  %v295 = vrot.slane %v290, 6
  %v296 = vrot.slane %v291, 6
  %297 = vrot.lane.b32.xlu0 %v292, 96
  %v298 = vpop.permute.xlu0 %297
  %299 = vrot.lane.b32.xlu0 %v293, 96
  %v300 = vpop.permute.xlu0 %299
  %301 = vrot.lane.b32.xlu0 %v294, 96
  %v302 = vpop.permute.xlu0 %301
  %303 = vrot.lane.b32.xlu0 %v295, 96
  %v304 = vpop.permute.xlu0 %303
  %305 = vrot.lane.b32.xlu0 %v296, 96
  %v306 = vpop.permute.xlu0 %305
  %vm307 = vcmask 785408
  %v308 = vsel %vm307, %v298, %v300
  %v309 = vsel %vm307, %v300, %v302
  %v310 = vsel %vm307, %v302, %v304
  %v311 = vsel %vm307, %v304, %v306
  %316 = vst [vmem:[#allocation2 + $0x40] sm:$0x1c] %v308
  %317 = vst [vmem:[#allocation2 + $0x48] sm:$0x1c] %v309
  %318 = vst [vmem:[#allocation2 + $0x50] sm:$0x1c] %v310
  %319 = vst [vmem:[#allocation2 + $0x58] sm:$0x1c] %v311
  %v320 = vld [vmem:[%s0] sm:$0x77]
  %v321 = vld [vmem:[%s0 + $0x8] sm:$0x77]
  %v322 = vld [vmem:[%s0 + $0x10] sm:$0x7]
  %326 = vst [vmem:[#allocation1] ss:$2 sm:$0xff] %v320
  %s327 = scalar_lea.vmem [#allocation1], 16
  %328 = vst [vmem:[%s327] ss:$2 sm:$0xff] %v321
  %s329 = scalar_lea.vmem [#allocation1], 32
  %330 = vst [vmem:[%s329] ss:$2 sm:$0xff] %v322
  %v331 = vld.sshfl [vmem:[#allocation1] sm:$0xff pattern:$0x75316420]
  %v332 = vld.sshfl [vmem:[#allocation1 + $0x8] sm:$0xff pattern:$0x75316420]
  %v333 = vld.sshfl [vmem:[#allocation1 + $0x10] sm:$0xff pattern:$0x75316420]
  %v334 = vld.sshfl [vmem:[#allocation1 + $0x18] sm:$0xff pattern:$0x75316420]
  %v335 = vld.sshfl [vmem:[#allocation1 + $0x20] sm:$0xff pattern:$0x75316420]
  %v336 = vrot.slane %v331, 3
  %v337 = vrot.slane %v332, 3
  %v338 = vrot.slane %v333, 3
  %v339 = vrot.slane %v334, 3
  %v340 = vrot.slane %v335, 3
  %341 = vrot.lane.b32.xlu0 %v336, 95
  %v342 = vpop.permute.xlu0 %341
  %343 = vrot.lane.b32.xlu0 %v337, 95
  %v344 = vpop.permute.xlu0 %343
  %345 = vrot.lane.b32.xlu0 %v338, 95
  %v346 = vpop.permute.xlu0 %345
  %347 = vrot.lane.b32.xlu0 %v339, 95
  %v348 = vpop.permute.xlu0 %347
  %349 = vrot.lane.b32.xlu0 %v340, 95
  %v350 = vpop.permute.xlu0 %349
  %vm351 = vcmask 777216
  %v352 = vsel %vm351, %v342, %v344
  %v353 = vsel %vm351, %v344, %v346
  %v354 = vsel %vm351, %v346, %v348
  %v355 = vsel %vm351, %v348, %v350
  %360 = vst [vmem:[#allocation2 + $0x40] sm:$0xe0] %v352
  %361 = vst [vmem:[#allocation2 + $0x48] sm:$0xe0] %v353
  %362 = vst [vmem:[#allocation2 + $0x50] sm:$0xe0] %v354
  %363 = vst [vmem:[#allocation2 + $0x58] sm:$0xe0] %v355
  %v364 = vld [vmem:[%s0] sm:$0x77]
  %v365 = vld [vmem:[%s0 + $0x8] sm:$0x77]
  %v366 = vld [vmem:[%s0 + $0x10] sm:$0x7]
  %370 = vst [vmem:[#allocation1] ss:$2 sm:$0xff] %v364
  %s371 = scalar_lea.vmem [#allocation1], 16
  %372 = vst [vmem:[%s371] ss:$2 sm:$0xff] %v365
  %s373 = scalar_lea.vmem [#allocation1], 32
  %374 = vst [vmem:[%s373] ss:$2 sm:$0xff] %v366
  %v375 = vld.sshfl [vmem:[#allocation1] sm:$0xff pattern:$0x75316420]
  %v376 = vld.sshfl [vmem:[#allocation1 + $0x8] sm:$0xff pattern:$0x75316420]
  %v377 = vld.sshfl [vmem:[#allocation1 + $0x10] sm:$0xff pattern:$0x75316420]
  %v378 = vld.sshfl [vmem:[#allocation1 + $0x18] sm:$0xff pattern:$0x75316420]
  %v379 = vld.sshfl [vmem:[#allocation1 + $0x20] sm:$0xff pattern:$0x75316420]
  %380 = vrot.lane.b32.xlu0 %v375, 94
  %v381 = vpop.permute.xlu0 %380
  %382 = vrot.lane.b32.xlu0 %v376, 94
  %v383 = vpop.permute.xlu0 %382
  %384 = vrot.lane.b32.xlu0 %v377, 94
  %v385 = vpop.permute.xlu0 %384
  %386 = vrot.lane.b32.xlu0 %v378, 94
  %v387 = vpop.permute.xlu0 %386
  %388 = vrot.lane.b32.xlu0 %v379, 94
  %v389 = vpop.permute.xlu0 %388
  %vm390 = vcmask 769024
  %v391 = vsel %vm390, %v381, %v383
  %v392 = vsel %vm390, %v383, %v385
  %v393 = vsel %vm390, %v385, %v387
  %v394 = vsel %vm390, %v387, %v389
  %399 = vst [vmem:[#allocation2 + $0x60] sm:$0x7] %v391
  %400 = vst [vmem:[#allocation2 + $0x68] sm:$0x7] %v392
  %401 = vst [vmem:[#allocation2 + $0x70] sm:$0x7] %v393
  %402 = vst [vmem:[#allocation2 + $0x78] sm:$0x7] %v394
  %v403 = vlaneseq
  %vm404 = vcmp.ge.s32.totalorder %v403, 0
  %vm405 = vcmp.lt.s32.totalorder %v403, 512
  %vm406 = vmand %vm404, %vm405
  %s407 = scalar_lea.vmem [#allocation2], 99
  %408 = vst.msk [vmem:[%s407] ss:$8 sm:$0xf] %vm406, 1.0
  %409 = vst.msk [vmem:[%s407] ss:$8 sm:$0x0] %vm406, 1.0
  %v410 = vld [vmem:[%s1] sm:$0xff]
  %v411 = vld [vmem:[#allocation2] sm:$0xff]
  %v412 = vld [vmem:[#allocation2 + $0x8] sm:$0xff]
  %v413 = vld [vmem:[#allocation2 + $0x10] sm:$0xff]
  %v414 = vld [vmem:[#allocation2 + $0x18] sm:$0xff]
  %v415 = vld [vmem:[#allocation2 + $0x20] sm:$0xff]
  %v416 = vld [vmem:[#allocation2 + $0x28] sm:$0xff]
  %v417 = vld [vmem:[#allocation2 + $0x30] sm:$0xff]
  %v418 = vld [vmem:[#allocation2 + $0x38] sm:$0xff]
  %v419 = vld [vmem:[#allocation2 + $0x40] sm:$0xff]
  %v420 = vld [vmem:[#allocation2 + $0x48] sm:$0xff]
  %v421 = vld [vmem:[#allocation2 + $0x50] sm:$0xff]
  %v422 = vld [vmem:[#allocation2 + $0x58] sm:$0xff]
  %v423 = vld [vmem:[#allocation2 + $0x60] sm:$0xff]
  %v424 = vld [vmem:[#allocation2 + $0x68] sm:$0xff]
  %v425 = vld [vmem:[#allocation2 + $0x70] sm:$0xff]
  %v426 = vld [vmem:[#allocation2 + $0x78] sm:$0xff]
  %vm427 = vcmask 261120
  %v429 = vsel %vm427, %v410, 0
  %431 = vmatpush.msra.mxu0 0.0
  %432 = vmatpush.msra.mxu0 0.0
  %433 = vmatpush.msra.mxu0 0.0
  %434 = vmatpush.msra.mxu0 0.0
  %435 = vmatpush.msra.mxu0 0.0
  %436 = vmatpush.msra.mxu0 0.0
  %437 = vmatpush.msra.mxu0 0.0
  %438 = vmatpush.msra.mxu0 0.0
  %439 = vmatpush.msra.mxu0 0.0
  %440 = vmatpush.msra.mxu0 0.0
  %441 = vmatpush.msra.mxu0 0.0
  %442 = vmatpush.msra.mxu0 0.0
  %443 = vmatpush.msra.mxu0 %v423
  %444 = vmatpush.msra.mxu0 %v419
  %445 = vmatpush.msra.mxu0 %v415
  %446 = vmatpush.msra.mxu0 %v411
  %447 = vmatmul.f32.gmra.mxu0 %v429
  %v448 = vpop.f32.mrf.mxu0
  %v449 = vadd.f32 0.0, %v448
  %450 = vdwg.mxu0
  %451 = vmatpush.msra.mxu0 0.0
  %452 = vmatpush.msra.mxu0 0.0
  %453 = vmatpush.msra.mxu0 0.0
  %454 = vmatpush.msra.mxu0 0.0
  %455 = vmatpush.msra.mxu0 0.0
  %456 = vmatpush.msra.mxu0 0.0
  %457 = vmatpush.msra.mxu0 0.0
  %458 = vmatpush.msra.mxu0 0.0
  %459 = vmatpush.msra.mxu0 0.0
  %460 = vmatpush.msra.mxu0 0.0
  %461 = vmatpush.msra.mxu0 0.0
  %462 = vmatpush.msra.mxu0 0.0
  %463 = vmatpush.msra.mxu0 %v424
  %464 = vmatpush.msra.mxu0 %v420
  %465 = vmatpush.msra.mxu0 %v416
  %466 = vmatpush.msra.mxu0 %v412
  %467 = vmatmul.f32.gmra.mxu0 %v429
  %v468 = vpop.f32.mrf.mxu0
  %v469 = vadd.f32 0.0, %v468
  %470 = vdwg.mxu0
  %471 = vmatpush.msra.mxu0 0.0
  %472 = vmatpush.msra.mxu0 0.0
  %473 = vmatpush.msra.mxu0 0.0
  %474 = vmatpush.msra.mxu0 0.0
  %475 = vmatpush.msra.mxu0 0.0
  %476 = vmatpush.msra.mxu0 0.0
  %477 = vmatpush.msra.mxu0 0.0
  %478 = vmatpush.msra.mxu0 0.0
  %479 = vmatpush.msra.mxu0 0.0
  %480 = vmatpush.msra.mxu0 0.0
  %481 = vmatpush.msra.mxu0 0.0
  %482 = vmatpush.msra.mxu0 0.0
  %483 = vmatpush.msra.mxu0 %v425
  %484 = vmatpush.msra.mxu0 %v421
  %485 = vmatpush.msra.mxu0 %v417
  %486 = vmatpush.msra.mxu0 %v413
  %487 = vmatmul.f32.gmra.mxu0 %v429
  %v488 = vpop.f32.mrf.mxu0
  %v489 = vadd.f32 0.0, %v488
  %490 = vdwg.mxu0
  %491 = vmatpush.msra.mxu0 0.0
  %492 = vmatpush.msra.mxu0 0.0
  %493 = vmatpush.msra.mxu0 0.0
  %494 = vmatpush.msra.mxu0 0.0
  %495 = vmatpush.msra.mxu0 0.0
  %496 = vmatpush.msra.mxu0 0.0
  %497 = vmatpush.msra.mxu0 0.0
  %498 = vmatpush.msra.mxu0 0.0
  %499 = vmatpush.msra.mxu0 0.0
  %500 = vmatpush.msra.mxu0 0.0
  %501 = vmatpush.msra.mxu0 0.0
  %502 = vmatpush.msra.mxu0 0.0
  %503 = vmatpush.msra.mxu0 %v426
  %504 = vmatpush.msra.mxu0 %v422
  %505 = vmatpush.msra.mxu0 %v418
  %506 = vmatpush.msra.mxu0 %v414
  %507 = vmatmul.f32.gmra.mxu0 %v429
  %v508 = vpop.f32.mrf.mxu0
  %v509 = vadd.f32 0.0, %v508
  %510 = vdwg.mxu0
  %v511 = vmax.f32 %v449, 0.0
  %v512 = vmax.f32 %v469, 0.0
  %v513 = vmax.f32 %v489, 0.0
  %v514 = vmax.f32 %v509, 0.0
  %v515 = vld [vmem:[%s2] sm:$0xff]
  %v516 = vld [vmem:[%s2 + $0x8] sm:$0xff]
  %v517 = vmul.f32 %v515, %v511
  %v518 = vmul.f32 %v516, %v512
  %v519 = vmul.f32 %v515, %v513
  %v520 = vmul.f32 %v516, %v514
  %v521 = vrot.slane %v517, 4
  %v522 = vadd.f32 %v517, %v521
  %v523 = vrot.slane %v522, 2
  %v524 = vadd.f32 %v522, %v523
  %v525 = vrot.slane %v524, 1
  %v526 = vadd.f32 %v524, %v525
  %v527 = vrot.slane %v518, 4
  %v528 = vadd.f32 %v518, %v527
  %v529 = vrot.slane %v528, 2
  %v530 = vadd.f32 %v528, %v529
  %v531 = vrot.slane %v530, 1
  %v532 = vadd.f32 %v530, %v531
  %v533 = vrot.slane %v519, 4
  %v534 = vadd.f32 %v519, %v533
  %v535 = vrot.slane %v534, 2
  %v536 = vadd.f32 %v534, %v535
  %v537 = vrot.slane %v536, 1
  %v538 = vadd.f32 %v536, %v537
  %v539 = vrot.slane %v520, 4
  %v540 = vadd.f32 %v520, %v539
  %v541 = vrot.slane %v540, 2
  %v542 = vadd.f32 %v540, %v541
  %v543 = vrot.slane %v542, 1
  %v544 = vadd.f32 %v542, %v543
  %s545 = scalar_lea.vmem %s2, 16
  %v546 = vld [vmem:[%s545] sm:$0xff]
  %v547 = vld [vmem:[%s545 + $0x8] sm:$0xff]
  %v548 = vmul.f32 %v546, %v511
  %v549 = vmul.f32 %v547, %v512
  %v550 = vmul.f32 %v546, %v513
  %v551 = vmul.f32 %v547, %v514
  %v552 = vrot.slane %v548, 4
  %v553 = vadd.f32 %v548, %v552
  %v554 = vrot.slane %v553, 2
  %v555 = vadd.f32 %v553, %v554
  %v556 = vrot.slane %v555, 1
  %v557 = vadd.f32 %v555, %v556
  %v558 = vrot.slane %v549, 4
  %v559 = vadd.f32 %v549, %v558
  %v560 = vrot.slane %v559, 2
  %v561 = vadd.f32 %v559, %v560
  %v562 = vrot.slane %v561, 1
  %v563 = vadd.f32 %v561, %v562
  %v564 = vrot.slane %v550, 4
  %v565 = vadd.f32 %v550, %v564
  %v566 = vrot.slane %v565, 2
  %v567 = vadd.f32 %v565, %v566
  %v568 = vrot.slane %v567, 1
  %v569 = vadd.f32 %v567, %v568
  %v570 = vrot.slane %v551, 4
  %v571 = vadd.f32 %v551, %v570
  %v572 = vrot.slane %v571, 2
  %v573 = vadd.f32 %v571, %v572
  %v574 = vrot.slane %v573, 1
  %v575 = vadd.f32 %v573, %v574
  %vm576 = vcmask 1040384
  %v577 = vsel %vm576, %v526, %v557
  %v578 = vsel %vm576, %v532, %v563
  %v579 = vsel %vm576, %v538, %v569
  %v580 = vsel %vm576, %v544, %v575
  %vm581 = vcmask 1041408
  %v582 = vsel %vm581, %v577, 0.0
  %v583 = vsel %vm581, %v578, 0.0
  %v584 = vadd.f32 %v582, %v583
  %585 = vadd.xlane.f32.xlu0 %v584
  %v586 = vpop.xlane.xlu0 %585
  %v587 = vsel %vm581, %v579, 0.0
  %v588 = vsel %vm581, %v580, 0.0
  %v589 = vadd.f32 %v587, %v588
  %590 = vadd.xlane.f32.xlu0 %v589
  %v591 = vpop.xlane.xlu0 %590
  %vm592 = vcmask 7168
  %v593 = vsel %vm592, %v586, %v591
  %v594 = vld [vmem:[%s3] sm:$0x3]
  %596 = vset.pattern.permute.xlu0 0
  %597 = vperm.xlu0 %596, %v594
  %v598 = vpop.permute.xlu0 %597
  %v600 = vadd.f32 %v593, %v598
  %v602 = vrot.slane %v600, 7
  %v604 = vsub.f32 %v600, %v602
  %v605 = vmul.f32 %v604, 1.442695
  %v606 = vpow.pop %v605
  %v607 = vadd.f32 %v606, 1.0
  %v608 = vrcp.pop %v607
  %v609 = vmul.f32 %v607, %v608
  %v610 = vsub.f32 1.0, %v609
  %v611 = vmul.f32 %v608, %v610
  %v612 = vadd.f32 %v608, %v611
  %vm613 = vweird.f32 %v607
  %vm614 = vweird.f32 %v608
  %vm615 = vmor %vm613, %vm614
  %v616 = vsel %vm615, %v608, %v612
  %v617 = vand.u32 2147483647, %v607
  %vm618 = vcmp.eq.f32.partialorder %v617, 8.507059e+37
  %v619 = vand.u32 %v607, 2147483648
  %v620 = vor.u32 1.1754944e-38, %v619
  %v621 = vsel %vm618, %v620, %v616
  %v622 = vmul.f32 1.0, %v621
  %623 = vst [vmem:[%s4] sm:$0xff] 0.0
  %vm624 = vcmask 9216
  %625 = vst.msk [vmem:[%s4] sm:$0x3] %vm624, %v600
  %vm626 = vcmask 9217
  %627 = vst.msk [vmem:[%s4 + $0x1] sm:$0x2] %vm626, %v622
  // Predicated region
  $region18: #{forward.1} parent=0 // pred_check
    _
  $region19: #{forward.1} parent=0 // pred_check_branch
    %629 = sbr.rel (0) target = $region21
  $region20: #{forward.1} parent=0 // pred_region
    _
  $region21: #{forward.1} parent=0 // pred_fallthru
    _
  // Predicated region
  $region22: #{forward.1} parent=0 // pred_check
    _
  $region23: #{forward.1} parent=0 // pred_check_branch
    %631 = sbr.rel (0) target = $region25
  $region24: #{forward.1} parent=0 // pred_region
    _
  $region25: #{forward.1} parent=0 // pred_fallthru
    _

</llo_original>
